<compile_context>
chip_gen: v7x
topology: tpu7x:2x2x1
jax: 0.10.0
libtpu: 0.0.40
codegen_flags: <defaults>
</compile_context>

<pallas_src>
import jax
import jax.numpy as jnp
from jax.experimental import pallas as pl
from jax.experimental.pallas import tpu as pltpu


def _bs_mul_kernel(w_ref, x_ref, out_ref):
    # w_ref:   (1, band_tile)      clamped weights (already in out dtype), resident per band tile
    # x_ref:   (tile_b, band_tile) input tile
    # out_ref: (tile_b, band_tile) output tile
    out_ref[...] = w_ref[...] * x_ref[...].astype(out_ref.dtype)


def _round_up(n, m):
    return ((n + m - 1) // m) * m


def _cdiv(a, b):
    return -(-a // b)


def _sublane_multiple(dtype):
    # rows per sublane group: 8 for 4-byte, 16 for 2-byte, 32 for 1-byte dtypes
    itemsize = jnp.dtype(dtype).itemsize
    return max(8, 32 // max(1, itemsize))


def _default_tile_bytes():
    # Per-generation tile target (batch-tile of x, in bytes).
    try:
        kind = jax.devices()[0].device_kind.lower()
    except Exception:
        return 4 << 20
    if "v7" in kind:
        return 8 << 20          # v7x: shortest per-step DMA, amortize 0.35us overhead
    if "v5" in kind and ("lite" in kind or "5e" in kind):
        return 3 << 20          # v5e: already ~85% of roofline, keep VMEM footprint small
    return 4 << 20              # v6e and others


def bs_layer_with_r(x, weights, *, target_tile_bytes=None, use_pallas=None):
    """Pallas implementation of BS_Layer_with_r.forward.

    Args:
      x:       (batch, band) float array
      weights: (1, band) raw learnable parameter
      target_tile_bytes: approx bytes of x per tile (None -> per-chip default)
      use_pallas: True/False to force, None -> auto (fallback for tiny inputs)
    Returns:
      (out, w_eff) with out: (batch, band) in promote_types(x, weights),
      w_eff: (1, band) in weights.dtype
    """
    batch, band = x.shape
    assert weights.shape == (1, band)

    # Effective weights: relu(1 - relu(1 - w)), in weights.dtype (tiny wrapper op).
    one = jnp.asarray(1, dtype=weights.dtype)
    zero = jnp.asarray(0, dtype=weights.dtype)
    w_eff = jnp.maximum(one - jnp.maximum(one - weights, zero), zero)

    out_dtype = jnp.promote_types(x.dtype, weights.dtype)
    x_itemsize = jnp.dtype(x.dtype).itemsize
    out_itemsize = jnp.dtype(out_dtype).itemsize

    # Small-problem fallback: the pallas_call boundary dominates for tiny inputs.
    if use_pallas is None:
        use_pallas = (batch * band * x_itemsize) >= (256 << 10)
    if not use_pallas:
        return (w_eff * x).astype(out_dtype), w_eff

    if target_tile_bytes is None:
        target_tile_bytes = _default_tile_bytes()

    sub = _sublane_multiple(x.dtype)

    # --- band tiling (lane axis): full band if it fits, else multiples of 128 ---
    if sub * band * x_itemsize > target_tile_bytes:
        band_tile = max(128, (target_tile_bytes // (sub * x_itemsize)) // 128 * 128)
    else:
        band_tile = band  # full array dim -> satisfies the (8,128) rule without padding

    # --- batch tiling (sublane axis) ---
    if batch <= sub:
        tile_b = batch  # full array dim
    else:
        tile_b = max(sub, (target_tile_bytes // (band_tile * x_itemsize)) // sub * sub)
        tile_b = min(tile_b, _round_up(batch, sub))
        # Guarantee >=2 grid steps so v7x's 2-TC "parallel" sharding engages.
        while _cdiv(batch, tile_b) < 2 and tile_b > sub:
            tile_b = max(sub, ((tile_b // 2) // sub) * sub)

    grid = (_cdiv(batch, tile_b), _cdiv(band, band_tile))

    # VMEM budget: double-buffered x + out tiles (+ small w tile), with headroom.
    tile_bytes = tile_b * band_tile
    vmem_needed = 2 * tile_bytes * (x_itemsize + out_itemsize) + 2 * band_tile * out_itemsize
    vmem_limit = min(48 << 20, max(32 << 20, vmem_needed + (8 << 20)))

    w_in = w_eff.astype(out_dtype)

    out = pl.pallas_call(
        _bs_mul_kernel,
        out_shape=jax.ShapeDtypeStruct((batch, band), out_dtype),
        grid_spec=pltpu.PrefetchScalarGridSpec(
            num_scalar_prefetch=0,
            grid=grid,
            in_specs=[
                pl.BlockSpec((1, band_tile), lambda i, j: (0, j)),       # w_eff
                pl.BlockSpec((tile_b, band_tile), lambda i, j: (i, j)),  # x tile
            ],
            out_specs=pl.BlockSpec((tile_b, band_tile), lambda i, j: (i, j)),
        ),
        compiler_params=pltpu.CompilerParams(
            dimension_semantics=("parallel", "parallel"),  # pure streamed multiply
            vmem_limit_bytes=vmem_limit,
        ),
        cost_estimate=pl.CostEstimate(
            flops=batch * band,
            transcendentals=0,
            bytes_accessed=batch * band * (x_itemsize + out_itemsize)
            + band * out_itemsize,
        ),
    )(w_in, x)

    return out, w_eff


def _reference(x, weights):
    w_eff = jnp.maximum(1.0 - jnp.maximum(1.0 - weights, 0.0), 0.0).astype(weights.dtype)
    return w_eff * x, w_eff


if __name__ == "__main__":
    key = jax.random.PRNGKey(0)
    k_x, k_w = jax.random.split(key)

    # Small hyperspectral-ish shapes; band deliberately not a multiple of 128 and
    # batch not a multiple of the tile to exercise the remainder-block path.
    batch, band = 100, 200

    # Parameter init matching torch.zeros(1, band) + 0.5
    weights_init = jnp.zeros((1, band), dtype=jnp.float32) + 0.5
    # A second weight set with values outside [0, 1] to exercise the clamp.
    weights_rand = 0.5 + 1.5 * jax.random.normal(k_w, (1, band), dtype=jnp.float32)

    x = jax.random.normal(k_x, (batch, band), dtype=jnp.float32)

    for w in (weights_init, weights_rand):
        # Force the Pallas path (demo shapes are below the auto-fallback threshold).
        out, w_eff = bs_layer_with_r(x, w, use_pallas=True)
        out = jax.block_until_ready(out)
        w_eff = jax.block_until_ready(w_eff)

        ref_out, ref_w = _reference(x, w)
        assert out.shape == (batch, band) and w_eff.shape == (1, band)
        assert jnp.allclose(out, ref_out, atol=1e-6)
        assert jnp.allclose(w_eff, ref_w, atol=1e-6)

    # Auto mode on a tiny input exercises the small-problem jnp fallback.
    out_s, w_s = bs_layer_with_r(x[:8], weights_init)
    out_s = jax.block_until_ready(out_s)
    ref_out_s, ref_w_s = _reference(x[:8], weights_init)
    assert jnp.allclose(out_s, ref_out_s, atol=1e-6)
    assert jnp.allclose(w_s, ref_w_s, atol=1e-6)

    print("KERNEL_OK")
</pallas_src>

<mosaic_0001>
module attributes {stable_mosaic.version = 11 : i64} {
  func.func @_bs_mul_kernel(%arg0: i32, %arg1: i32, %arg2: memref<1x200xf32, #tpu.memory_space<vmem>>, %arg3: memref<48x200xf32, #tpu.memory_space<vmem>>, %arg4: memref<48x200xf32, #tpu.memory_space<vmem>>) attributes {dimension_semantics = [#tpu.dimension_semantics<parallel>, #tpu.dimension_semantics<parallel>], iteration_bounds = array<i64: 3, 1>, scalar_prefetch = 0 : i64, scratch_operands = 0 : i64, tpu.core_type = #tpu.core_type<tc>, window_params = [{transform_indices = @transform_0, window_bounds = array<i64: 1, 200>}, {transform_indices = @transform_1, window_bounds = array<i64: 48, 200>}, {transform_indices = @transform_2, window_bounds = array<i64: 48, 200>}]} {
    %c0 = arith.constant 0 : index
    %c0_0 = arith.constant 0 : index
    %0 = vector.load %arg2[%c0, %c0_0] : memref<1x200xf32, #tpu.memory_space<vmem>>, vector<1x200xf32>
    %c0_1 = arith.constant 0 : index
    %c0_2 = arith.constant 0 : index
    %1 = vector.load %arg3[%c0_1, %c0_2] : memref<48x200xf32, #tpu.memory_space<vmem>>, vector<48x200xf32>
    %2 = vector.broadcast %0 : vector<1x200xf32> to vector<48x200xf32>
    %3 = arith.mulf %2, %1 : vector<48x200xf32>
    %c0_3 = arith.constant 0 : index
    %c0_4 = arith.constant 0 : index
    %4 = vector.load %arg4[%c0_3, %c0_4] : memref<48x200xf32, #tpu.memory_space<vmem>>, vector<48x200xf32>
    tpu.vector_store %arg4[%c0_3, %c0_4], %3 {strides = array<i32>} : memref<48x200xf32, #tpu.memory_space<vmem>>, vector<48x200xf32>,
    return
  }
  func.func @transform_0(%arg0: i32, %arg1: i32) -> (i32, i32) {
    %c0_i32 = arith.constant 0 : i32
    %c0_i32_0 = arith.constant 0 : i32
    return %c0_i32, %arg1 : i32, i32
  }
  func.func @transform_1(%arg0: i32, %arg1: i32) -> (i32, i32) {
    %c0_i32 = arith.constant 0 : i32
    return %arg0, %arg1 : i32, i32
  }
  func.func @transform_2(%arg0: i32, %arg1: i32) -> (i32, i32) {
    %c0_i32 = arith.constant 0 : i32
    return %arg0, %arg1 : i32, i32
  }
}

</mosaic_0001>

<llo_original>
// kernel: tpu_custom_call.1
$region0: #{tpu_custom_call.1}
  #allocation0 [shape = 'u32[]', space=smem, size = 0x4, offset = 0x4, fixed_abs, tag = 'smem constant byte address 0x4 - core index']
  #allocation1 [shape = 'u32[144,128]{1,0:T(1,128)}', space=vmem, size = 0x12000, scoped, tag = 'internal scratch']
  %s0 = inlined_call_operand.vmem [shape: f32[1,200], index: 0, kind: input, shape index: {}]
  %s1 = inlined_call_operand.vmem [shape: f32[100,200], index: 1, kind: input, shape index: {}]
  %s2 = inlined_call_operand.vmem [shape: f32[100,200], index: 2, kind: output, shape index: {}]
  %s3 = sld [smem:[#allocation0]]
  $region67: #{tpu_custom_call.1} parent=0
    _
  %s5 = ssub.s32 1, %s3
  %s6 = scalar_select 0, %s5, %s3
  $region1: #{tpu_custom_call.1} parent=0
    #allocation2 [shape = 'u8[98304]{0}', space=vmem, size = 0x18000, scoped, tag = 'output window, operand 0']
    loop: start=0, step=1, limit=5
    $region2: #{tpu_custom_call.1} parent=1 // loop_pre_header
      _
    $region3: #{tpu_custom_call.1} parent=1 // loop_header
      %s8 = sphi 0, %s12
      %p9 = scmp.ge.s32.totalorder %s8, 5
      %s15 = sphi 0, %s27
      %s16 = sphi 0, %s23
      %s17 = sphi 0, %s15
      %s18 = sphi 0, %s16
      %s19 = sphi 0, %s17
      %s20 = sphi 0, %s18
      %s30 = sphi 0, %s32
      %s33 = sphi 0, %s30
      %s34 = sphi 0, %s33
      %s50 = sphi 0, %s34
      %s58 = sphi 0, %s60
      %s61 = sphi 0, %s58
      %s62 = sphi 0, %s61
      %s78 = sphi 0, %s62
      %s86 = sphi 0, %s88
      %s89 = sphi 0, %s86
      %s90 = sphi 0, %s89
      %s106 = sphi 0, %s90
    $region4: #{tpu_custom_call.1} parent=1 // loop_header_branch
      %11 = sbr.rel (%p9) target = $region8
    $region5: #{tpu_custom_call.1} parent=1 // loop_body
      %s13 = ssub.s32 %s8, 1
      %s14 = ssub.s32 %s8, 2
      %s21 = sadd.s32 1, %s16
      %p22 = scmp.ge.s32.totalorder %s21, 1
      %s23 = scalar_select %p22, 0, %s21
      %s24 = sadd.s32 1, %s15
      %s25 = scalar_select %p22, %s24, %s15
      %p26 = scmp.ge.s32.totalorder %s25, 3
      %s27 = scalar_select %p26, 0, %s25
      %s28 = ssub.s32 %s16, %s23
      %p29 = scmp.eq.s32.totalorder %s28, 0
      %s31 = sadd.s32 %s30, 1
      %s32 = scalar_select %p29, %s30, %s31
      %p35 = pneg %p29
      %p36 = scmp.eq.s32.totalorder %s8, 2
      %p37 = por %p35, %p36
      %p38 = scmp.ne.s32.totalorder %s30, %s33
      %p39 = scmp.eq.s32.totalorder %s8, 0
      %p40 = por %p38, %p39
      %p41 = scmp.ne.s32.totalorder %s30, %s33
      %p42 = scmp.eq.s32.totalorder %s13, 2
      %p43 = por %p41, %p42
      %p44 = scmp.ne.s32.totalorder %s33, %s34
      %p45 = scmp.eq.s32.totalorder %s13, 0
      %p46 = por %p44, %p45
      %p47 = scmp.ne.s32.totalorder %s33, %s34
      %p48 = scmp.eq.s32.totalorder %s14, 2
      %p49 = por %p47, %p48
      %p51 = scmp.ne.s32.totalorder %s34, %s50
      %p52 = scmp.eq.s32.totalorder %s14, 0
      %p53 = por %p51, %p52
      %s54 = ssub.s32 %s15, %s27
      %s55 = ssub.s32 %s16, %s23
      %s56 = sor.u32 %s54, %s55
      %p57 = scmp.eq.s32.totalorder %s56, 0
      %s59 = sadd.s32 %s58, 1
      %s60 = scalar_select %p57, %s58, %s59
      %p63 = pneg %p57
      %p64 = scmp.eq.s32.totalorder %s8, 2
      %p65 = por %p63, %p64
      %p66 = scmp.ne.s32.totalorder %s58, %s61
      %p67 = scmp.eq.s32.totalorder %s8, 0
      %p68 = por %p66, %p67
      %p69 = scmp.ne.s32.totalorder %s58, %s61
      %p70 = scmp.eq.s32.totalorder %s13, 2
      %p71 = por %p69, %p70
      %p72 = scmp.ne.s32.totalorder %s61, %s62
      %p73 = scmp.eq.s32.totalorder %s13, 0
      %p74 = por %p72, %p73
      %p75 = scmp.ne.s32.totalorder %s61, %s62
      %p76 = scmp.eq.s32.totalorder %s14, 2
      %p77 = por %p75, %p76
      %p79 = scmp.ne.s32.totalorder %s62, %s78
      %p80 = scmp.eq.s32.totalorder %s14, 0
      %p81 = por %p79, %p80
      %s82 = ssub.s32 %s15, %s27
      %s83 = ssub.s32 %s16, %s23
      %s84 = sor.u32 %s82, %s83
      %p85 = scmp.eq.s32.totalorder %s84, 0
      %s87 = sadd.s32 %s86, 1
      %s88 = scalar_select %p85, %s86, %s87
      %p91 = pneg %p85
      %p92 = scmp.eq.s32.totalorder %s8, 2
      %p93 = por %p91, %p92
      %p94 = scmp.ne.s32.totalorder %s86, %s89
      %p95 = scmp.eq.s32.totalorder %s8, 0
      %p96 = por %p94, %p95
      %p97 = scmp.ne.s32.totalorder %s86, %s89
      %p98 = scmp.eq.s32.totalorder %s13, 2
      %p99 = por %p97, %p98
      %p100 = scmp.ne.s32.totalorder %s89, %s90
      %p101 = scmp.eq.s32.totalorder %s13, 0
      %p102 = por %p100, %p101
      %p103 = scmp.ne.s32.totalorder %s89, %s90
      %p104 = scmp.eq.s32.totalorder %s14, 2
      %p105 = por %p103, %p104
      %p107 = scmp.ne.s32.totalorder %s90, %s106
      %p108 = scmp.eq.s32.totalorder %s14, 0
      %p109 = por %p107, %p108
      %p110 = scmp.le.s32.totalorder 1, %s8
      %p111 = scmp.lt.s32.totalorder %s8, 4
      %p112 = pnand %p110, %p111
      %p113 = pneg %p112
      // Predicated region
      $region9: #{tpu_custom_call.1} parent=5 // pred_check
        _
      $region10: #{tpu_custom_call.1} parent=5 // pred_check_branch
        %115 = sbr.rel (%p112) target = $region12
      $region11: #{tpu_custom_call.1} parent=5 // pred_region
        %s116 = ssub.s32 %s8, 1
        // Predicated region
        $region13: #{tpu_custom_call.1} parent=11 // pred_check
          %p117 = pneg %p46
        $region14: #{tpu_custom_call.1} parent=11 // pred_check_branch
          %119 = sbr.rel (%p117) target = $region16
        $region15: #{tpu_custom_call.1} parent=11 // pred_region
          %s120 = smul.u32 2, %s18
          %p121 = scmp.lt.s32.totalorder %s120, 1
          %s122 = scalar_select %p121, %s120, 1
          %s123 = scalar_lea.vmem %s0, %s122
          %s124 = smul.u32 2, %s18
        $region16: #{tpu_custom_call.1} parent=11 // pred_fallthru
          _
      $region12: #{tpu_custom_call.1} parent=5 // pred_fallthru
        _
      %p125 = scmp.lt.s32.totalorder %s8, 3
      // Predicated region
      $region17: #{tpu_custom_call.1} parent=5 // pred_check
        %p126 = pneg %p125
      $region18: #{tpu_custom_call.1} parent=5 // pred_check_branch
        %128 = sbr.rel (%p126) target = $region20
      $region19: #{tpu_custom_call.1} parent=5 // pred_region
        // Predicated region
        $region21: #{tpu_custom_call.1} parent=19 // pred_check
          %p129 = pneg %p68
        $region22: #{tpu_custom_call.1} parent=19 // pred_check_branch
          %131 = sbr.rel (%p129) target = $region24
        $region23: #{tpu_custom_call.1} parent=19 // pred_region
          %s132 = smul.u32 6, %s15
          %s133 = smul.u32 2, %s16
          %s134 = ssub.s32 13, %s132
          %p135 = scmp.lt.s32.totalorder %s134, 6
          %s136 = scalar_select %p135, %s134, 6
          %s137 = smul.u32 128, %s136
          %s138 = smul.u32 %s137, 2
          %p139 = scmp.lt.s32.totalorder %s132, 12
          %s140 = scalar_select %p139, %s132, 12
          %p141 = scmp.lt.s32.totalorder %s133, 1
          %s142 = scalar_select %p141, %s133, 1
          %s143 = smul.addr %s140, 2
          %s144 = sadd.s32 %s142, %s143
          %s145 = smul.addr %s144, 8
          %s146 = scalar_lea.vmem %s1, %s145
          %s147 = smul.u32 6, %s15
          %s148 = smul.u32 2, %s16
          %s149 = ssub.s32 13, %s147
          %p150 = scmp.lt.s32.totalorder %s149, 6
          %s151 = scalar_select %p150, %s149, 6
          %s152 = smul.u32 128, %s151
          %s153 = smul.u32 %s152, 2
        $region24: #{tpu_custom_call.1} parent=19 // pred_fallthru
          _
      $region20: #{tpu_custom_call.1} parent=5 // pred_fallthru
        _
      %p154 = scmp.le.s32.totalorder 1, %s8
      %p155 = scmp.lt.s32.totalorder %s8, 4
      %p156 = pnand %p154, %p155
      %p157 = pneg %p156
      // Predicated region
      $region25: #{tpu_custom_call.1} parent=5 // pred_check
        _
      $region26: #{tpu_custom_call.1} parent=5 // pred_check_branch
        %159 = sbr.rel (%p156) target = $region28
      $region27: #{tpu_custom_call.1} parent=5 // pred_region
        %s160 = ssub.s32 %s8, 1
        %s161 = smul.u32 2, %s18
        %p162 = scmp.lt.s32.totalorder %s161, 1
        %s163 = scalar_select %p162, %s161, 1
        %s164 = scalar_lea.vmem %s0, %s163
        %p165 = pneg %p46
        %p166 = pneg %p43
        %s167 = smul.u32 6, %s17
        %s168 = smul.u32 2, %s18
        %s169 = ssub.s32 13, %s167
        %p170 = scmp.lt.s32.totalorder %s169, 6
        %s171 = scalar_select %p170, %s169, 6
        %s172 = smul.u32 128, %s171
        %s173 = smul.u32 %s172, 2
        %p174 = scmp.lt.s32.totalorder %s167, 12
        %s175 = scalar_select %p174, %s167, 12
        %p176 = scmp.lt.s32.totalorder %s168, 1
        %s177 = scalar_select %p176, %s168, 1
        %s178 = smul.addr %s175, 2
        %s179 = sadd.s32 %s177, %s178
        %s180 = smul.addr %s179, 8
        %s181 = scalar_lea.vmem %s1, %s180
        %p182 = pneg %p74
        %p183 = pneg %p71
        %p184 = pneg %p102
        %p185 = pneg %p99
        %s186 = sand.u32 %s89, 1
        %s187 = sand.u32 %s89, 1
        %s188 = smul.addr %s187, 96
        %s189 = scalar_lea.vmem [#allocation2], %s188
        %s190 = smul.u32 2, %s18
        %p191 = scmp.lt.s32.totalorder %s190, 1
        %s192 = scalar_select %p191, %s190, 1
        %s193 = scalar_lea.vmem %s0, %s192
        %s194 = smul.u32 2, %s18
        %s195 = smul.u32 6, %s17
        %s196 = smul.u32 2, %s18
        %s197 = ssub.s32 13, %s195
        %p198 = scmp.lt.s32.totalorder %s197, 6
        %s199 = scalar_select %p198, %s197, 6
        %s200 = smul.u32 128, %s199
        %s201 = smul.u32 %s200, 2
        %p202 = scmp.lt.s32.totalorder %s195, 12
        %s203 = scalar_select %p202, %s195, 12
        %p204 = scmp.lt.s32.totalorder %s196, 1
        %s205 = scalar_select %p204, %s196, 1
        %s206 = smul.addr %s203, 2
        %s207 = sadd.s32 %s205, %s206
        %s208 = smul.addr %s207, 8
        %s209 = scalar_lea.vmem %s1, %s208
        %s210 = smul.u32 6, %s17
        %s211 = smul.u32 2, %s18
        %s212 = ssub.s32 13, %s210
        %p213 = scmp.lt.s32.totalorder %s212, 6
        %s214 = scalar_select %p213, %s212, 6
        %s215 = smul.u32 128, %s214
        %s216 = smul.u32 %s215, 2
        %s217 = smul.u32 6, %s17
        %s218 = smul.u32 2, %s18
        %s219 = ssub.s32 13, %s217
        %p220 = scmp.lt.s32.totalorder %s219, 6
        %s221 = scalar_select %p220, %s219, 6
        %s222 = smul.u32 128, %s221
        %s223 = smul.u32 %s222, 2
        %v224 = vld [vmem:[%s193] sm:$0x3]
        %v225 = vld [vmem:[%s209] sm:$0xff]
        %v226 = vld [vmem:[%s209 + $0x8] sm:$0xff]
        %v227 = vld [vmem:[%s209 + $0x10] sm:$0xff]
        %v228 = vld [vmem:[%s209 + $0x18] sm:$0xff]
        %v229 = vld [vmem:[%s209 + $0x20] sm:$0xff]
        %v230 = vld [vmem:[%s209 + $0x28] sm:$0xff]
        %v231 = vld [vmem:[%s209 + $0x30] sm:$0xff]
        %v232 = vld [vmem:[%s209 + $0x38] sm:$0xff]
        %v233 = vld [vmem:[%s209 + $0x40] sm:$0xff]
        %v234 = vld [vmem:[%s209 + $0x48] sm:$0xff]
        %v235 = vld [vmem:[%s209 + $0x50] sm:$0xff]
        %v236 = vld [vmem:[%s209 + $0x58] sm:$0xff]
        %v238 = vlaneseq
        %v239 = vshrl.u32 %v238, 7
        %v240 = vsub.s32 0, %v239
        %v241 = vrot.slane %v224, %v240
        %v242 = vlaneseq
        %v243 = vshrl.u32 %v242, 7
        %v244 = vsub.s32 1, %v243
        %v245 = vrot.slane %v224, %v244
        %v248 = vmul.f32 %v241, %v225
        %v249 = vmul.f32 %v245, %v226
        %v250 = vmul.f32 %v241, %v227
        %v251 = vmul.f32 %v245, %v228
        %v252 = vmul.f32 %v241, %v229
        %v253 = vmul.f32 %v245, %v230
        %v254 = vmul.f32 %v241, %v231
        %v255 = vmul.f32 %v245, %v232
        %v256 = vmul.f32 %v241, %v233
        %v257 = vmul.f32 %v245, %v234
        %v258 = vmul.f32 %v241, %v235
        %v259 = vmul.f32 %v245, %v236
        %260 = vst [vmem:[%s189] sm:$0xff] %v248
        %vm261 = vcmask 588800
        %262 = vst.msk [vmem:[%s189 + $0x8] sm:$0xff] %vm261, %v249
        %263 = vst [vmem:[%s189 + $0x10] sm:$0xff] %v250
        %264 = vst.msk [vmem:[%s189 + $0x18] sm:$0xff] %vm261, %v251
        %265 = vst [vmem:[%s189 + $0x20] sm:$0xff] %v252
        %266 = vst.msk [vmem:[%s189 + $0x28] sm:$0xff] %vm261, %v253
        %267 = vst [vmem:[%s189 + $0x30] sm:$0xff] %v254
        %268 = vst.msk [vmem:[%s189 + $0x38] sm:$0xff] %vm261, %v255
        %269 = vst [vmem:[%s189 + $0x40] sm:$0xff] %v256
        %270 = vst.msk [vmem:[%s189 + $0x48] sm:$0xff] %vm261, %v257
        %271 = vst [vmem:[%s189 + $0x50] sm:$0xff] %v258
        %272 = vst.msk [vmem:[%s189 + $0x58] sm:$0xff] %vm261, %v259
        %s273 = sand.u32 %s89, 1
        %s274 = sand.u32 %s89, 1
        %s275 = smul.addr %s274, 96
        %s276 = scalar_lea.vmem [#allocation2], %s275
        // Predicated region
        $region29: #{tpu_custom_call.1} parent=27 // pred_check
          %p277 = pneg %p99
        $region30: #{tpu_custom_call.1} parent=27 // pred_check_branch
          %279 = sbr.rel (%p277) target = $region32
        $region31: #{tpu_custom_call.1} parent=27 // pred_region
          %s280 = smul.u32 6, %s17
          %s281 = smul.u32 2, %s18
          %s282 = ssub.s32 13, %s280
          %p283 = scmp.lt.s32.totalorder %s282, 6
          %s284 = scalar_select %p283, %s282, 6
          %s285 = smul.u32 128, %s284
          %s286 = smul.u32 %s285, 2
          %p287 = scmp.ne.s32.totalorder 0, %s286
          %s288 = smul.addr %s280, 2
          %s289 = sadd.s32 %s281, %s288
          %s290 = smul.addr %s289, 8
          %s291 = scalar_lea.vmem %s2, %s290
          // Predicated region
          $region33: #{tpu_custom_call.1} parent=31 // pred_check
            %p292 = pneg %p287
          $region34: #{tpu_custom_call.1} parent=31 // pred_check_branch
            %294 = sbr.rel (%p292) target = $region36
          $region35: #{tpu_custom_call.1} parent=31 // pred_region
            // Predicated region
            $region37: #{tpu_custom_call.1} parent=35 // pred_check
              _
            $region38: #{tpu_custom_call.1} parent=35 // pred_check_branch
              %296 = sbr.rel (0) target = $region40
            $region39: #{tpu_custom_call.1} parent=35 // pred_region
              %s297 = sdiv.u32.pop %s284, 6
              %s298 = srem.u32.pop %s284, 6
              // While loop
              $region41: #{tpu_custom_call.1} parent=39 // loop_pre_header
                _
              $region42: #{tpu_custom_call.1} parent=39 // loop_header
                %s300 = sphi 0, %s302
                %p301 = scmp.ge.s32.totalorder %s300, %s297
                %s305 = sphi 0, %s334
                %s306 = sphi %s276, %s337
                %s307 = sphi %s291, %s338
              $region43: #{tpu_custom_call.1} parent=39 // loop_header_branch
                %304 = sbr.rel (%p301) target = $region47
              $region44: #{tpu_custom_call.1} parent=39 // loop_body
                %v308 = vld [vmem:[%s306] sm:$0xff]
                %309 = vst [vmem:[%s307] sm:$0xff] %v308
                %v310 = vld [vmem:[%s306 + $0x10] sm:$0xff]
                %311 = vst [vmem:[%s307 + $0x10] sm:$0xff] %v310
                %v312 = vld [vmem:[%s306 + $0x20] sm:$0xff]
                %313 = vst [vmem:[%s307 + $0x20] sm:$0xff] %v312
                %v314 = vld [vmem:[%s306 + $0x30] sm:$0xff]
                %315 = vst [vmem:[%s307 + $0x30] sm:$0xff] %v314
                %v316 = vld [vmem:[%s306 + $0x40] sm:$0xff]
                %317 = vst [vmem:[%s307 + $0x40] sm:$0xff] %v316
                %v318 = vld [vmem:[%s306 + $0x50] sm:$0xff]
                %319 = vst [vmem:[%s307 + $0x50] sm:$0xff] %v318
                %v320 = vld [vmem:[%s306 + $0x8] sm:$0xff]
                %321 = vst [vmem:[%s307 + $0x8] sm:$0xff] %v320
                %v322 = vld [vmem:[%s306 + $0x18] sm:$0xff]
                %323 = vst [vmem:[%s307 + $0x18] sm:$0xff] %v322
                %v324 = vld [vmem:[%s306 + $0x28] sm:$0xff]
                %325 = vst [vmem:[%s307 + $0x28] sm:$0xff] %v324
                %v326 = vld [vmem:[%s306 + $0x38] sm:$0xff]
                %327 = vst [vmem:[%s307 + $0x38] sm:$0xff] %v326
                %v328 = vld [vmem:[%s306 + $0x48] sm:$0xff]
                %329 = vst [vmem:[%s307 + $0x48] sm:$0xff] %v328
                %v330 = vld [vmem:[%s306 + $0x58] sm:$0xff]
                %331 = vst [vmem:[%s307 + $0x58] sm:$0xff] %v330
                %s332 = sadd.s32 1, %s305
                %p333 = scmp.ge.s32.totalorder %s332, %s297
                %s334 = scalar_select %p333, 0, %s332
                %s335 = smul.u32 %s334, 96
                %s336 = smul.u32 %s334, 96
                %s337 = scalar_lea.vmem %s276, %s335 [#allocation2]
                %s338 = scalar_lea.vmem %s291, %s336
              $region45: #{tpu_custom_call.1} parent=39 // loop_footer
                %s302 = sadd.s32 %s300, 1
              $region46: #{tpu_custom_call.1} parent=39 // loop_footer_branch
                %299 = sbr.rel target = $region42
              $region47: #{tpu_custom_call.1} parent=39 // loop_exit
                _
              %s339 = sdiv.u32.pop %s284, 6
              %s340 = srem.u32.pop %s284, 6
              %s341 = smul.u32 %s339, 6
              %s342 = smul.u32 16, %s341
              %s343 = scalar_lea.vmem %s276, %s342 [#allocation2]
              %s344 = smul.u32 16, %s341
              %s345 = scalar_lea.vmem %s291, %s344
              // While loop
              $region48: #{tpu_custom_call.1} parent=39 // loop_pre_header
                _
              $region49: #{tpu_custom_call.1} parent=39 // loop_header
                %s347 = sphi 0, %s349
                %p348 = scmp.ge.s32.totalorder %s347, %s340
                %s352 = sphi 0, %s361
                %s353 = sphi %s343, %s364
                %s354 = sphi %s345, %s365
              $region50: #{tpu_custom_call.1} parent=39 // loop_header_branch
                %351 = sbr.rel (%p348) target = $region54
              $region51: #{tpu_custom_call.1} parent=39 // loop_body
                %v355 = vld [vmem:[%s353] sm:$0xff]
                %356 = vst [vmem:[%s354] sm:$0xff] %v355
                %v357 = vld [vmem:[%s353 + $0x8] sm:$0xff]
                %358 = vst [vmem:[%s354 + $0x8] sm:$0xff] %v357
                %s359 = sadd.s32 1, %s352
                %p360 = scmp.ge.s32.totalorder %s359, %s340
                %s361 = scalar_select %p360, 0, %s359
                %s362 = smul.u32 %s361, 16
                %s363 = smul.u32 %s361, 16
                %s364 = scalar_lea.vmem %s343, %s362 [#allocation2]
                %s365 = scalar_lea.vmem %s345, %s363
              $region52: #{tpu_custom_call.1} parent=39 // loop_footer
                %s349 = sadd.s32 %s347, 1
              $region53: #{tpu_custom_call.1} parent=39 // loop_footer_branch
                %346 = sbr.rel target = $region49
              $region54: #{tpu_custom_call.1} parent=39 // loop_exit
                _
            $region40: #{tpu_custom_call.1} parent=35 // pred_fallthru
              _
            // Predicated region
            $region55: #{tpu_custom_call.1} parent=35 // pred_check
              _
            $region56: #{tpu_custom_call.1} parent=35 // pred_check_branch
              %367 = sbr.rel target = $region58
            $region57: #{tpu_custom_call.1} parent=35 // pred_region
              _
            $region58: #{tpu_custom_call.1} parent=35 // pred_fallthru
              _
          $region36: #{tpu_custom_call.1} parent=31 // pred_fallthru
            _
          %368 = vnop
        $region32: #{tpu_custom_call.1} parent=27 // pred_fallthru
          _
      $region28: #{tpu_custom_call.1} parent=5 // pred_fallthru
        _
      %p369 = scmp.le.s32.totalorder 2, %s8
      // Predicated region
      $region59: #{tpu_custom_call.1} parent=5 // pred_check
        %p370 = pneg %p369
      $region60: #{tpu_custom_call.1} parent=5 // pred_check_branch
        %372 = sbr.rel (%p370) target = $region62
      $region61: #{tpu_custom_call.1} parent=5 // pred_region
        %s373 = ssub.s32 %s8, 2
        // Predicated region
        $region63: #{tpu_custom_call.1} parent=61 // pred_check
          %p374 = pneg %p105
        $region64: #{tpu_custom_call.1} parent=61 // pred_check_branch
          %376 = sbr.rel (%p374) target = $region66
        $region65: #{tpu_custom_call.1} parent=61 // pred_region
          %s377 = sand.u32 %s90, 1
          %s378 = sand.u32 %s90, 1
          %s379 = smul.addr %s378, 96
          %s380 = scalar_lea.vmem [#allocation2], %s379
        $region66: #{tpu_custom_call.1} parent=61 // pred_fallthru
          _
      $region62: #{tpu_custom_call.1} parent=5 // pred_fallthru
        _
    $region6: #{tpu_custom_call.1} parent=1 // loop_footer
      %s12 = sadd.s32 1, %s8
    $region7: #{tpu_custom_call.1} parent=1 // loop_footer_branch
      %7 = sbr.rel target = $region3
    $region8: #{tpu_custom_call.1} parent=1 // loop_exit
      _

</llo_original>
